<compile_context>
chip_gen: v7x
topology: tpu7x:2x2x1
jax: 0.10.0
libtpu: 0.0.40
codegen_flags: <defaults>
</compile_context>

<pallas_src>
import math

import jax
import jax.numpy as jnp
from jax import lax
from jax.experimental import pallas as pl
from jax.experimental.pallas import tpu as pltpu

_LANES = 128


def _cdiv(a: int, b: int) -> int:
    return -(-a // b)


def _round_up(x: int, m: int) -> int:
    return _cdiv(x, m) * m


def _default_num_partials() -> int:
    # Two TensorCores only on v7x; on 1-TC chips a >1 parallel split just
    # risks a dead padded block.
    try:
        kind = jax.devices()[0].device_kind.lower()
    except Exception:
        return 1
    return 2 if ("v7" in kind or "tpu7" in kind) else 1


def _make_bce_kernel(*, valid_rows_last: int, needs_mask: bool):
    def bce_kernel(t_ref, x_ref, o_ref, acc_ref):
        p = pl.program_id(0)
        s = pl.program_id(1)

        @pl.when(s == 0)
        def _():
            acc_ref[...] = jnp.zeros_like(acc_ref)

        x = x_ref[...].astype(jnp.float32)
        t = t_ref[...].astype(jnp.float32)
        # Numerically stable BCE-with-logits:
        #   max(x, 0) - x*t + log(1 + exp(-|x|))
        # NOTE: log(1 + .) instead of log1p is intentional: whenever exp(-|x|)
        # is small enough that log1p would matter, the max(x, 0) term dominates
        # the element value, so the absolute error is far below f32 eps of the
        # result. Do not "simplify" this further.
        elem = jnp.maximum(x, 0.0) - x * t + jnp.log(1.0 + jnp.exp(-jnp.abs(x)))

        def accumulate(e):
            # Leading-axis sum = pure VPU vreg adds into a tiny (8,128) slab.
            acc_ref[...] += e.reshape(-1, 8, _LANES).sum(axis=0)

        if needs_mask:
            # Only the global last block is partial; mask its garbage rows.
            is_last = ((p == pl.num_programs(0) - 1)
                       & (s == pl.num_programs(1) - 1))

            @pl.when(is_last)
            def _():
                rid = lax.broadcasted_iota(jnp.int32, elem.shape, 0)
                accumulate(jnp.where(rid < valid_rows_last, elem, 0.0))

            @pl.when(jnp.logical_not(is_last))
            def _():
                accumulate(elem)
        else:
            accumulate(elem)

        @pl.when(s == pl.num_programs(1) - 1)
        def _():
            o_ref[...] = acc_ref[...][None, :, :]

    return bce_kernel


def entropy_loss(targets, inputs, *, block_rows_target: int = 8192,
                 num_partials=None):
    """BCEWithLogitsLoss(reduction='mean')(input=inputs, target=targets).

    targets, inputs: arrays of identical shape (e.g. (B, C, H, W)), any dtype;
    cast to float32 inside the kernel.  Returns a scalar float32 loss.
    """
    assert targets.shape == inputs.shape, (targets.shape, inputs.shape)
    n_total = math.prod(targets.shape)

    t1 = targets.reshape(-1)
    x1 = inputs.reshape(-1)

    n_tail = n_total % _LANES            # ragged tail (< 128 elements)
    n_main = n_total - n_tail

    tail_sum = jnp.float32(0.0)
    if n_tail:
        xt = x1[n_main:].astype(jnp.float32)
        tt = t1[n_main:].astype(jnp.float32)
        tail_sum = jnp.sum(jnp.maximum(xt, 0.0) - xt * tt
                           + jnp.log1p(jnp.exp(-jnp.abs(xt))))

    if n_main == 0:
        # Entire input is smaller than one lane row; plain jnp is cheaper.
        return tail_sum / jnp.float32(n_total)

    if n_tail:
        # Rare unaligned path: kernel runs on the 128-aligned prefix.
        x_main, t_main = x1[:n_main], t1[:n_main]
    else:
        # Common case: zero-copy reshape view of the whole input.
        x_main, t_main = x1, t1

    rows = n_main // _LANES
    block_rows = max(8, min(block_rows_target, _round_up(rows, 8)) // 8 * 8)
    n_blocks = _cdiv(rows, block_rows)
    valid_rows_last = rows - (n_blocks - 1) * block_rows
    needs_mask = (rows % block_rows) != 0

    if num_partials is None:
        num_partials = _default_num_partials()
    num_p = num_partials if (num_partials > 1
                             and n_blocks % num_partials == 0) else 1
    steps_per_p = n_blocks // num_p

    x2 = x_main.reshape(rows, _LANES)
    t2 = t_main.reshape(rows, _LANES)

    kernel = _make_bce_kernel(valid_rows_last=valid_rows_last,
                              needs_mask=needs_mask)

    partials = pl.pallas_call(
        kernel,
        out_shape=jax.ShapeDtypeStruct((num_p, 8, _LANES), jnp.float32),
        grid_spec=pltpu.PrefetchScalarGridSpec(
            num_scalar_prefetch=0,
            grid=(num_p, steps_per_p),
            in_specs=[
                pl.BlockSpec((block_rows, _LANES),
                             lambda p, s: (p * steps_per_p + s, 0)),
                pl.BlockSpec((block_rows, _LANES),
                             lambda p, s: (p * steps_per_p + s, 0)),
            ],
            out_specs=pl.BlockSpec((1, 8, _LANES), lambda p, s: (p, 0, 0)),
            scratch_shapes=[pltpu.VMEM((8, _LANES), jnp.float32)],
        ),
        compiler_params=pltpu.CompilerParams(
            dimension_semantics=("parallel", "arbitrary"),
            vmem_limit_bytes=48 * 1024 * 1024,
        ),
    )(t2, x2)

    # Tiny finish in JAX: sum the (num_p, 8, 128) partials, add the tail, divide.
    return (jnp.sum(partials) + tail_sum) / jnp.float32(n_total)


def _reference(targets, inputs):
    t = targets.reshape(-1).astype(jnp.float32)
    x = inputs.reshape(-1).astype(jnp.float32)
    elem = jnp.maximum(x, 0.0) - x * t + jnp.log1p(jnp.exp(-jnp.abs(x)))
    return jnp.mean(elem)


if __name__ == "__main__":
    key = jax.random.PRNGKey(0)
    keys = jax.random.split(key, 8)

    def check(t, x, name, **kw):
        loss = entropy_loss(t, x, **kw)
        jax.block_until_ready(loss)
        ref = _reference(t, x)
        assert jnp.allclose(loss, ref, rtol=1e-5, atol=1e-6), (name, loss, ref)

    # Main test: small aligned NCHW shape consistent with the module.
    B, C, H, W = 2, 4, 16, 16
    t0 = (jax.random.uniform(keys[0], (B, C, H, W)) > 0.5).astype(jnp.float32)
    x0 = jax.random.normal(keys[1], (B, C, H, W), dtype=jnp.float32)
    check(t0, x0, "aligned")

    # Multi-step grid: forces several accumulation steps + a partial edge block.
    t1_ = (jax.random.uniform(keys[2], (2, 4, 40, 48)) > 0.5).astype(jnp.float32)
    x1_ = jax.random.normal(keys[3], (2, 4, 40, 48), dtype=jnp.float32)
    check(t1_, x1_, "multi-step", block_rows_target=32)

    # Unaligned total with an aligned prefix: exercises kernel + jnp tail + mask.
    t2_ = (jax.random.uniform(keys[4], (2, 3, 17, 19)) > 0.5).astype(jnp.float32)
    x2_ = jax.random.normal(keys[5], (2, 3, 17, 19), dtype=jnp.float32)
    check(t2_, x2_, "prefix+tail")

    # Tiny non-lane-aligned shape: pure jnp tail path.
    t3_ = (jax.random.uniform(keys[6], (1, 3, 5, 7)) > 0.5).astype(jnp.float32)
    x3_ = jax.random.normal(keys[7], (1, 3, 5, 7), dtype=jnp.float32)
    check(t3_, x3_, "tiny-unaligned")

    print("KERNEL_OK")
</pallas_src>

<mosaic_0001>
module attributes {stable_mosaic.version = 11 : i64} {
  func.func @bce_kernel(%arg0: i32, %arg1: i32, %arg2: memref<16x128xf32, #tpu.memory_space<vmem>>, %arg3: memref<16x128xf32, #tpu.memory_space<vmem>>, %arg4: memref<1x8x128xf32, #tpu.memory_space<vmem>>, %arg5: memref<8x128xf32, #tpu.memory_space<vmem>>) attributes {dimension_semantics = [#tpu.dimension_semantics<parallel>, #tpu.dimension_semantics<arbitrary>], iteration_bounds = array<i64: 1, 1>, scalar_prefetch = 0 : i64, scratch_operands = 1 : i64, tpu.core_type = #tpu.core_type<tc>, window_params = [{transform_indices = @transform_0, window_bounds = array<i64: 16, 128>}, {transform_indices = @transform_1, window_bounds = array<i64: 16, 128>}, {transform_indices = @transform_2, window_bounds = array<i64: 1, 8, 128>}]} {
    %c0_i32 = arith.constant 0 : i32
    %0 = arith.cmpi eq, %arg1, %c0_i32 : i32
    %1 = arith.extui %0 : i1 to i32
    %c0_i32_0 = arith.constant 0 : i32
    %2 = arith.cmpi ne, %1, %c0_i32_0 : i32
    scf.if %2 {
      %cst_13 = arith.constant 0.000000e+00 : f32
      %25 = vector.broadcast %cst_13 : f32 to vector<8x128xf32>
      %c0_14 = arith.constant 0 : index
      %c0_15 = arith.constant 0 : index
      %26 = vector.load %arg5[%c0_14, %c0_15] : memref<8x128xf32, #tpu.memory_space<vmem>>, vector<8x128xf32>
      tpu.vector_store %arg5[%c0_14, %c0_15], %25 {strides = array<i32>} : memref<8x128xf32, #tpu.memory_space<vmem>>, vector<8x128xf32>,
    } else {
    }
    %c0 = arith.constant 0 : index
    %c0_1 = arith.constant 0 : index
    %3 = vector.load %arg3[%c0, %c0_1] : memref<16x128xf32, #tpu.memory_space<vmem>>, vector<16x128xf32>
    %c0_2 = arith.constant 0 : index
    %c0_3 = arith.constant 0 : index
    %4 = vector.load %arg2[%c0_2, %c0_3] : memref<16x128xf32, #tpu.memory_space<vmem>>, vector<16x128xf32>
    %cst = arith.constant 0.000000e+00 : f32
    %5 = vector.broadcast %cst : f32 to vector<16x128xf32>
    %6 = arith.maximumf %3, %5 : vector<16x128xf32>
    %7 = arith.mulf %3, %4 : vector<16x128xf32>
    %8 = arith.subf %6, %7 : vector<16x128xf32>
    %9 = math.absf %3 : vector<16x128xf32>
    %cst_4 = arith.constant 0.000000e+00 : f32
    %10 = vector.broadcast %cst_4 : f32 to vector<16x128xf32>
    %11 = arith.subf %10, %9 : vector<16x128xf32>
    %12 = math.exp %11 : vector<16x128xf32>
    %cst_5 = arith.constant 1.000000e+00 : f32
    %13 = vector.broadcast %cst_5 : f32 to vector<16x128xf32>
    %14 = arith.addf %13, %12 : vector<16x128xf32>
    %15 = math.log %14 : vector<16x128xf32>
    %16 = arith.addf %8, %15 : vector<16x128xf32>
    %c0_6 = arith.constant 0 : index
    %c0_7 = arith.constant 0 : index
    %17 = vector.load %arg5[%c0_6, %c0_7] : memref<8x128xf32, #tpu.memory_space<vmem>>, vector<8x128xf32>
    %18 = vector.shape_cast %16 : vector<16x128xf32> to vector<2x8x128xf32>
    %cst_8 = arith.constant dense<0.000000e+00> : vector<8x128xf32>
    %19 = vector.multi_reduction <add>, %18, %cst_8 [0] : vector<2x8x128xf32> to vector<8x128xf32>
    %20 = arith.addf %17, %19 : vector<8x128xf32>
    %c0_9 = arith.constant 0 : index
    %c0_10 = arith.constant 0 : index
    %21 = vector.load %arg5[%c0_9, %c0_10] : memref<8x128xf32, #tpu.memory_space<vmem>>, vector<8x128xf32>
    tpu.vector_store %arg5[%c0_9, %c0_10], %20 {strides = array<i32>} : memref<8x128xf32, #tpu.memory_space<vmem>>, vector<8x128xf32>,
    %c0_i32_11 = arith.constant 0 : i32
    %22 = arith.cmpi eq, %arg1, %c0_i32_11 : i32
    %23 = arith.extui %22 : i1 to i32
    %c0_i32_12 = arith.constant 0 : i32
    %24 = arith.cmpi ne, %23, %c0_i32_12 : i32
    scf.if %24 {
      %c0_13 = arith.constant 0 : index
      %c0_14 = arith.constant 0 : index
      %25 = vector.load %arg5[%c0_13, %c0_14] : memref<8x128xf32, #tpu.memory_space<vmem>>, vector<8x128xf32>
      %26 = vector.shape_cast %25 : vector<8x128xf32> to vector<1x8x128xf32>
      %c0_15 = arith.constant 0 : index
      %c0_16 = arith.constant 0 : index
      %c0_17 = arith.constant 0 : index
      %27 = vector.load %arg4[%c0_15, %c0_16, %c0_17] : memref<1x8x128xf32, #tpu.memory_space<vmem>>, vector<1x8x128xf32>
      tpu.vector_store %arg4[%c0_15, %c0_16, %c0_17], %26 {strides = array<i32>} : memref<1x8x128xf32, #tpu.memory_space<vmem>>, vector<1x8x128xf32>,
    } else {
    }
    return
  }
  func.func @transform_0(%arg0: i32, %arg1: i32) -> (i32, i32) {
    %c1_i32 = arith.constant 1 : i32
    %0 = arith.muli %arg0, %c1_i32 : i32
    %1 = arith.addi %0, %arg1 : i32
    %c0_i32 = arith.constant 0 : i32
    %c0_i32_0 = arith.constant 0 : i32
    return %1, %c0_i32 : i32, i32
  }
  func.func @transform_1(%arg0: i32, %arg1: i32) -> (i32, i32) {
    %c1_i32 = arith.constant 1 : i32
    %0 = arith.muli %arg0, %c1_i32 : i32
    %1 = arith.addi %0, %arg1 : i32
    %c0_i32 = arith.constant 0 : i32
    %c0_i32_0 = arith.constant 0 : i32
    return %1, %c0_i32 : i32, i32
  }
  func.func @transform_2(%arg0: i32, %arg1: i32) -> (i32, i32, i32) {
    %c0_i32 = arith.constant 0 : i32
    %c0_i32_0 = arith.constant 0 : i32
    %c0_i32_1 = arith.constant 0 : i32
    return %arg0, %c0_i32, %c0_i32_0 : i32, i32, i32
  }
}

</mosaic_0001>

<llo_original>
// kernel: tpu_custom_call.1
$region0: #{tpu_custom_call.1}
  #allocation0 [shape = 'u32[]', space=smem, size = 0x4, offset = 0x4, fixed_abs, tag = 'smem constant byte address 0x4 - core index']
  #allocation1 [shape = 'u32[144,128]{1,0:T(1,128)}', space=vmem, size = 0x12000, scoped, tag = 'internal scratch']
  #allocation2 [shape = 'f32[8,128]{1,0:T(8,128)}', space=vmem, size = 0x1000, scoped, tag = 'scratch operand']
  %s0 = inlined_call_operand.hbm [shape: f32[16,128], index: 0, kind: input, shape index: {}]
  %s1 = inlined_call_operand.hbm [shape: f32[16,128], index: 1, kind: input, shape index: {}]
  %s2 = inlined_call_operand.hbm [shape: f32[1,8,128], index: 2, kind: output, shape index: {}]
  %s3 = sld [smem:[#allocation0]]
  $region34: #{tpu_custom_call.1} parent=0
    _
  %s5 = ssub.s32 1, %s3
  %s6 = scalar_select 0, %s5, %s3
  $region1: #{tpu_custom_call.1} parent=0
    #allocation3 [shape = 'u8[8192]{0}', space=vmem, size = 0x2000, scoped, tag = 'input window, operand 0, single buffered']
    #allocation4 [shape = 's32[1]{0}', space=sflag, size = 0x4, scoped, tag = 'scoped memory for tpu_custom_call.1']
    #allocation5 [shape = 's32[1]{0}', space=sflag, size = 0x4, scoped, tag = 'scoped memory for tpu_custom_call.1']
    #allocation6 [shape = 'u8[8192]{0}', space=vmem, size = 0x2000, scoped, tag = 'input window, operand 1, single buffered']
    #allocation7 [shape = 's32[1]{0}', space=sflag, size = 0x4, scoped, tag = 'scoped memory for tpu_custom_call.1']
    #allocation8 [shape = 'u8[4096]{0}', space=vmem, size = 0x1000, scoped, tag = 'output window, operand 0, single buffered']
    %7 = vsyncpa [#allocation4], 0
    %8 = vsyncpa [#allocation7], 0
    %9 = vsyncpa [#allocation5], 0
    // Predicated region
    $region2: #{tpu_custom_call.1} parent=1 // pred_check
      _
    $region3: #{tpu_custom_call.1} parent=1 // pred_check_branch
      %11 = sbr.rel (0) target = $region5
    $region4: #{tpu_custom_call.1} parent=1 // pred_region
      %s12 = sadd.s32 0, 0
      %s13 = smul.u32 2, %s12
      %s15 = ssub.s32 256, 256
      %16 = vsyncadd [#allocation4], %s15
      %s17 = smul.addr %s13, 128
      %s18 = scalar_lea.hbm %s0, %s17
      %s19 = sshll.u32 [#allocation3], 4
      %s20 = int_to_ptr.vmem [resolvable:$true] %s19
      %25 = dma.hbm_to_vmem [thread:$0]  %s18, 256, %s20, [#allocation4], 128, 128, 8
    $region5: #{tpu_custom_call.1} parent=1 // pred_fallthru
      _
    // Predicated region
    $region6: #{tpu_custom_call.1} parent=1 // pred_check
      _
    $region7: #{tpu_custom_call.1} parent=1 // pred_check_branch
      %27 = sbr.rel (0) target = $region9
    $region8: #{tpu_custom_call.1} parent=1 // pred_region
      %s28 = sadd.s32 0, 0
      %s29 = smul.u32 2, %s28
      %s31 = ssub.s32 256, 256
      %32 = vsyncadd [#allocation7], %s31
      %s33 = smul.addr %s29, 128
      %s34 = scalar_lea.hbm %s1, %s33
      %s35 = sshll.u32 [#allocation6], 4
      %s36 = int_to_ptr.vmem [resolvable:$true] %s35
      %41 = dma.hbm_to_vmem [thread:$0]  %s34, 256, %s36, [#allocation7], 128, 128, 8
    $region9: #{tpu_custom_call.1} parent=1 // pred_fallthru
      _
    // Predicated region
    $region10: #{tpu_custom_call.1} parent=1 // pred_check
      _
    $region11: #{tpu_custom_call.1} parent=1 // pred_check_branch
      %43 = sbr.rel (0) target = $region13
    $region12: #{tpu_custom_call.1} parent=1 // pred_region
      %44 = dma.done [#allocation4], 256
    $region13: #{tpu_custom_call.1} parent=1 // pred_fallthru
      _
    // Predicated region
    $region14: #{tpu_custom_call.1} parent=1 // pred_check
      _
    $region15: #{tpu_custom_call.1} parent=1 // pred_check_branch
      %46 = sbr.rel (0) target = $region17
    $region16: #{tpu_custom_call.1} parent=1 // pred_region
      %47 = dma.done [#allocation7], 256
    $region17: #{tpu_custom_call.1} parent=1 // pred_fallthru
      _
    %s48 = sadd.s32 0, 0
    %s49 = smul.u32 2, %s48
    %s50 = sadd.s32 0, 0
    %s51 = smul.u32 2, %s50
    %p52 = scmp.eq.s32.totalorder 0, 0
    // Predicated region
    $region18: #{tpu_custom_call.1} parent=1 // pred_check
      %p53 = pneg %p52
    $region19: #{tpu_custom_call.1} parent=1 // pred_check_branch
      %55 = sbr.rel (%p53) target = $region21
    $region20: #{tpu_custom_call.1} parent=1 // pred_region
      %56 = vst [vmem:[#allocation2] sm:$0xff] 0.0
    $region21: #{tpu_custom_call.1} parent=1 // pred_fallthru
      _
    %v57 = vld [vmem:[#allocation6] sm:$0xff]
    %v58 = vld [vmem:[#allocation6 + $0x8] sm:$0xff]
    %v59 = vld [vmem:[#allocation3] sm:$0xff]
    %v60 = vld [vmem:[#allocation3 + $0x8] sm:$0xff]
    %v61 = vmax.f32 %v57, 0.0
    %v62 = vmax.f32 %v58, 0.0
    %v63 = vmul.f32 %v57, %v59
    %v64 = vmul.f32 %v58, %v60
    %v65 = vsub.f32 %v61, %v63
    %v66 = vsub.f32 %v62, %v64
    %v67 = vand.u32 2147483647, %v57
    %v68 = vand.u32 2147483647, %v58
    %v69 = vsub.f32 0.0, %v67
    %v70 = vsub.f32 0.0, %v68
    %v71 = vmul.f32 %v69, 1.442695
    %v72 = vpow.pop %v71
    %v73 = vmul.f32 %v70, 1.442695
    %v74 = vpow.pop %v73
    %v75 = vadd.f32 %v72, 1.0
    %v76 = vadd.f32 %v74, 1.0
    %v77 = vlog2.pop %v75
    %v78 = vmul.f32 %v77, 0.6931472
    %v79 = vlog2.pop %v76
    %v80 = vmul.f32 %v79, 0.6931472
    %v81 = vadd.f32 %v65, %v78
    %v82 = vadd.f32 %v66, %v80
    %v83 = vld [vmem:[#allocation2] sm:$0xff]
    %v84 = vadd.f32 %v81, %v82
    %v85 = vadd.f32 %v83, %v84
    %86 = vst [vmem:[#allocation2] sm:$0xff] %v85
    // Predicated region
    $region22: #{tpu_custom_call.1} parent=1 // pred_check
      %p87 = pneg %p52
    $region23: #{tpu_custom_call.1} parent=1 // pred_check_branch
      %89 = sbr.rel (%p87) target = $region25
    $region24: #{tpu_custom_call.1} parent=1 // pred_region
      %v90 = vld [vmem:[#allocation2] sm:$0xff]
      %91 = vst [vmem:[#allocation8] sm:$0xff] %v90
    $region25: #{tpu_custom_call.1} parent=1 // pred_fallthru
      _
    // Predicated region
    $region26: #{tpu_custom_call.1} parent=1 // pred_check
      _
    $region27: #{tpu_custom_call.1} parent=1 // pred_check_branch
      %93 = sbr.rel (0) target = $region29
    $region28: #{tpu_custom_call.1} parent=1 // pred_region
      %s95 = ssub.s32 128, 128
      %96 = vsyncadd [#allocation5], %s95
      %s98 = sshll.u32 [#allocation8], 4
      %s99 = int_to_ptr.vmem [resolvable:$true] %s98
      %101 = dma.vmem_to_hbm [thread:$0]  %s99, 128, %s2, [#allocation5]
    $region29: #{tpu_custom_call.1} parent=1 // pred_fallthru
      _
    // Predicated region
    $region30: #{tpu_custom_call.1} parent=1 // pred_check
      _
    $region31: #{tpu_custom_call.1} parent=1 // pred_check_branch
      %103 = sbr.rel (0) target = $region33
    $region32: #{tpu_custom_call.1} parent=1 // pred_region
      %104 = dma.done [#allocation5], 128
    $region33: #{tpu_custom_call.1} parent=1 // pred_fallthru
      _
    %105 = vsyncpa [#allocation4], 1
    %106 = vsyncpa [#allocation7], 1
    %107 = vsyncpa [#allocation5], 1

</llo_original>
